<compile_context>
chip_gen: v6e
topology: v6e:2x2x1
jax: 0.10.0
libtpu: 0.0.40
codegen_flags: <defaults>
</compile_context>

<pallas_src>
import jax
import jax.numpy as jnp
from jax.experimental import pallas as pl
from jax.experimental.pallas import tpu as pltpu


def _linear_kernel(x_ref, w_ref, b_ref, o_ref):
    # x_ref: [TB, P] (streamed), w_ref: [P, C] (resident),
    # b_ref: [1, C] (resident, f32), o_ref: [TB, C].
    acc = jnp.dot(x_ref[...], w_ref[...], preferred_element_type=jnp.float32)
    o_ref[...] = (acc + b_ref[...]).astype(o_ref.dtype)


def _round_up(n, m):
    return ((n + m - 1) // m) * m


# VMEM-safe ceiling for the batch tile (rows).  At P=32 / C=10 this keeps
# 2*(tb*P*4) + 2*(tb*C*4) + W + bias well under the 32 MiB scoped budget
# shared by v5e / v6e / v7x defaults.
_MAX_BLOCK_ROWS = 65536


def logistic_regression_forward(x, weight, bias, *, block_rows=32768):
    """y = x @ weight.T + bias  (PyTorch nn.Linear semantics).

    x:      [B, pca_size]            (f32 or bf16; streamed as-is, no cast)
    weight: [num_classes, pca_size]  (PyTorch layout)
    bias:   [num_classes]
    returns [B, num_classes] in x.dtype

    block_rows: batch-tile size (rows per grid step).  Rounded to the sublane
                multiple of x's dtype and clamped to a VMEM-safe ceiling.
                Ragged last tiles are handled by Pallas block masking
                (no padding pass over x).
    """
    B, P = x.shape
    C = weight.shape[0]
    out_dtype = x.dtype

    # Pre-transpose W once in plain JAX so the kernel does x @ W directly.
    # Match x's streaming dtype for the (tiny) weight; keep bias in f32 so the
    # epilogue add happens at full precision.
    w_t = weight.T.astype(x.dtype)                  # [P, C]
    b2d = bias.reshape(1, C).astype(jnp.float32)    # keep 2D for TPU layout

    # Sublane multiple: 16 for bf16 (2 rows packed per sublane), else 8.
    sub = 16 if x.dtype == jnp.bfloat16 else 8

    tb = int(min(max(block_rows, sub), _MAX_BLOCK_ROWS))
    tb = _round_up(tb, sub)
    tb = min(tb, _round_up(B, sub))                 # don't exceed the batch

    grid = (pl.cdiv(B, tb),)                        # partial last block is masked

    out = pl.pallas_call(
        _linear_kernel,
        out_shape=jax.ShapeDtypeStruct((B, C), out_dtype),
        grid=grid,
        in_specs=[
            pl.BlockSpec((tb, P), lambda i: (i, 0)),   # x: streamed per tile
            pl.BlockSpec((P, C), lambda i: (0, 0)),    # W: resident in VMEM
            pl.BlockSpec((1, C), lambda i: (0, 0)),    # bias: resident
        ],
        out_specs=pl.BlockSpec((tb, C), lambda i: (i, 0)),
        compiler_params=pltpu.CompilerParams(
            # Batch tiles are independent -> shard across both TCs on v7x.
            dimension_semantics=("parallel",),
            # Explicit budget safe on v5e/v6e/v7x (v7x scoped default = 32 MiB).
            vmem_limit_bytes=32 * 1024 * 1024,
        ),
    )(x, w_t, b2d)

    return out


if __name__ == "__main__":
    # Shapes implied by the module: batch=8, pca_size=32, num_classes=10.
    B, PCA, NUM_CLASSES = 8, 32, 10

    key = jax.random.PRNGKey(0)
    kx, kw, kb = jax.random.split(key, 3)

    x = jax.random.normal(kx, (B, PCA), dtype=jnp.float32)
    # PyTorch nn.Linear parameter shapes: W [C, P], b [C].
    bound = 1.0 / (PCA ** 0.5)
    weight = jax.random.uniform(kw, (NUM_CLASSES, PCA),
                                minval=-bound, maxval=bound, dtype=jnp.float32)
    bias = jax.random.uniform(kb, (NUM_CLASSES,),
                              minval=-bound, maxval=bound, dtype=jnp.float32)

    # 1) Base path (single tile, f32) — matches PyTorch nn.Linear exactly.
    y = jax.block_until_ready(logistic_regression_forward(x, weight, bias))
    y_ref = x @ weight.T + bias
    assert y.shape == (B, NUM_CLASSES)
    assert jnp.allclose(y, y_ref, atol=1e-5, rtol=1e-5)

    # 2) Multi-tile path with a ragged (masked) last tile — no padding pass.
    B2 = 300
    x2 = jax.random.normal(jax.random.PRNGKey(1), (B2, PCA), dtype=jnp.float32)
    y2 = jax.block_until_ready(
        logistic_regression_forward(x2, weight, bias, block_rows=128))
    y2_ref = x2 @ weight.T + bias
    assert y2.shape == (B2, NUM_CLASSES)
    assert jnp.allclose(y2, y2_ref, atol=1e-5, rtol=1e-5)
    assert jnp.all(jnp.isfinite(y2))   # masked OOB rows never leak into output

    # 3) x already bf16 (caller-provided): kernel streams bf16 directly,
    #    weight cast to bf16 (tiny), f32 MXU accumulation.  No wrapper cast.
    x3 = x2.astype(jnp.bfloat16)
    y3 = jax.block_until_ready(
        logistic_regression_forward(x3, weight, bias, block_rows=128))
    y3_ref = x3.astype(jnp.float32) @ weight.T + bias
    assert y3.dtype == jnp.bfloat16
    assert jnp.allclose(y3.astype(jnp.float32), y3_ref, atol=5e-2, rtol=5e-2)

    print("KERNEL_OK")
</pallas_src>

<mosaic_0001>
module attributes {stable_mosaic.version = 11 : i64} {
  func.func @_linear_kernel(%arg0: i32, %arg1: memref<8x32xf32, #tpu.memory_space<vmem>>, %arg2: memref<32x10xf32, #tpu.memory_space<vmem>>, %arg3: memref<1x10xf32, #tpu.memory_space<vmem>>, %arg4: memref<8x10xf32, #tpu.memory_space<vmem>>) attributes {dimension_semantics = [#tpu.dimension_semantics<parallel>], iteration_bounds = array<i64: 1>, scalar_prefetch = 0 : i64, scratch_operands = 0 : i64, tpu.core_type = #tpu.core_type<tc>, window_params = [{transform_indices = @transform_0, window_bounds = array<i64: 8, 32>}, {pipeline_mode = #tpu.pipeline_mode<synchronous>, transform_indices = @transform_1, window_bounds = array<i64: 32, 10>}, {pipeline_mode = #tpu.pipeline_mode<synchronous>, transform_indices = @transform_2, window_bounds = array<i64: 1, 10>}, {transform_indices = @transform_3, window_bounds = array<i64: 8, 10>}]} {
    %c0 = arith.constant 0 : index
    %c0_0 = arith.constant 0 : index
    %0 = vector.load %arg1[%c0, %c0_0] : memref<8x32xf32, #tpu.memory_space<vmem>>, vector<8x32xf32>
    %c0_1 = arith.constant 0 : index
    %c0_2 = arith.constant 0 : index
    %1 = vector.load %arg2[%c0_1, %c0_2] : memref<32x10xf32, #tpu.memory_space<vmem>>, vector<32x10xf32>
    %cst = arith.constant dense<0.000000e+00> : vector<8x10xf32>
    %2 = tpu.matmul %0, %1, %cst {dimension_numbers = #tpu.dot_dimension_numbers<[1], [0], [0], [1], [0, 0, 1, 1], [], []>} : vector<8x32xf32>, vector<32x10xf32>, vector<8x10xf32> -> vector<8x10xf32>
    %c0_3 = arith.constant 0 : index
    %c0_4 = arith.constant 0 : index
    %3 = vector.load %arg3[%c0_3, %c0_4] : memref<1x10xf32, #tpu.memory_space<vmem>>, vector<1x10xf32>
    %4 = vector.broadcast %3 : vector<1x10xf32> to vector<8x10xf32>
    %5 = arith.addf %2, %4 : vector<8x10xf32>
    %c0_5 = arith.constant 0 : index
    %c0_6 = arith.constant 0 : index
    %6 = vector.load %arg4[%c0_5, %c0_6] : memref<8x10xf32, #tpu.memory_space<vmem>>, vector<8x10xf32>
    tpu.vector_store %arg4[%c0_5, %c0_6], %5 {strides = array<i32>} : memref<8x10xf32, #tpu.memory_space<vmem>>, vector<8x10xf32>,
    return
  }
  func.func @transform_0(%arg0: i32) -> (i32, i32) {
    %c0_i32 = arith.constant 0 : i32
    %c0_i32_0 = arith.constant 0 : i32
    return %arg0, %c0_i32 : i32, i32
  }
  func.func @transform_1(%arg0: i32) -> (i32, i32) {
    %c0_i32 = arith.constant 0 : i32
    %c0_i32_0 = arith.constant 0 : i32
    %c0_i32_1 = arith.constant 0 : i32
    return %c0_i32, %c0_i32_0 : i32, i32
  }
  func.func @transform_2(%arg0: i32) -> (i32, i32) {
    %c0_i32 = arith.constant 0 : i32
    %c0_i32_0 = arith.constant 0 : i32
    %c0_i32_1 = arith.constant 0 : i32
    return %c0_i32, %c0_i32_0 : i32, i32
  }
  func.func @transform_3(%arg0: i32) -> (i32, i32) {
    %c0_i32 = arith.constant 0 : i32
    %c0_i32_0 = arith.constant 0 : i32
    return %arg0, %c0_i32 : i32, i32
  }
}

</mosaic_0001>

<llo_original>
// kernel: tpu_custom_call.1
$region0: #{tpu_custom_call.1}
  #allocation0 [shape = 'u32[]', space=smem, size = 0x4, offset = 0x4, fixed_abs, tag = 'smem constant byte address 0x4 - core index']
  #allocation1 [shape = 'u32[144,128]{1,0:T(1,128)}', space=vmem, size = 0x12000, scoped, tag = 'internal scratch']
  %s0 = inlined_call_operand.vmem [shape: f32[8,32], index: 0, kind: input, shape index: {}]
  %s1 = inlined_call_operand.vmem [shape: f32[32,10], index: 1, kind: input, shape index: {}]
  %s2 = inlined_call_operand.vmem [shape: f32[1,10], index: 2, kind: input, shape index: {}]
  %s3 = inlined_call_operand.hbm [shape: f32[8,10], index: 3, kind: output, shape index: {}]
  %s4 = sld [smem:[#allocation0]]
  $region22: #{tpu_custom_call.1} parent=0
    _
  %s6 = ssub.s32 1, %s4
  %s7 = scalar_select 0, %s6, %s4
  $region1: #{tpu_custom_call.1} parent=0
    #allocation2 [shape = 'u8[4096]{0}', space=vmem, size = 0x1000, scoped, tag = 'output window, operand 0, single buffered']
    #allocation3 [shape = 's32[1]{0}', space=sflag, size = 0x4, scoped, tag = 'scoped memory for tpu_custom_call.1']
    %8 = vsyncpa [#allocation3], 0
    // Predicated region
    $region2: #{tpu_custom_call.1} parent=1 // pred_check
      _
    $region3: #{tpu_custom_call.1} parent=1 // pred_check_branch
      %10 = sbr.rel (0) target = $region5
    $region4: #{tpu_custom_call.1} parent=1 // pred_region
      _
    $region5: #{tpu_custom_call.1} parent=1 // pred_fallthru
      _
    // Predicated region
    $region6: #{tpu_custom_call.1} parent=1 // pred_check
      _
    $region7: #{tpu_custom_call.1} parent=1 // pred_check_branch
      %12 = sbr.rel (0) target = $region9
    $region8: #{tpu_custom_call.1} parent=1 // pred_region
      _
    $region9: #{tpu_custom_call.1} parent=1 // pred_fallthru
      _
    // Predicated region
    $region10: #{tpu_custom_call.1} parent=1 // pred_check
      _
    $region11: #{tpu_custom_call.1} parent=1 // pred_check_branch
      %14 = sbr.rel (0) target = $region13
    $region12: #{tpu_custom_call.1} parent=1 // pred_region
      _
    $region13: #{tpu_custom_call.1} parent=1 // pred_fallthru
      _
    %v15 = vld [vmem:[%s0] sm:$0xff]
    %v16 = vld [vmem:[%s1] sm:$0xff]
    %v17 = vld [vmem:[%s1 + $0x8] sm:$0xff]
    %v18 = vld [vmem:[%s1 + $0x10] sm:$0xff]
    %v19 = vld [vmem:[%s1 + $0x18] sm:$0xff]
    %v20 = vld [vmem:[%s2] sm:$0x1]
    %v22 = vlaneseq
    %v23 = vshrl.u32 %v22, 7
    %v24 = vsub.s32 0, %v23
    %v25 = vrot.slane %v20, %v24
    %vm27 = vcmask 261120
    %v29 = vsel %vm27, %v15, 0
    %31 = vmatprep.subr.mxu0 0.0
    %32 = vmatpush1.msra.mxu0 0.0
    %33 = vmatprep.subr.mxu0 0.0
    %34 = vmatpush1.msra.mxu0 0.0
    %35 = vmatprep.subr.mxu0 0.0
    %36 = vmatpush1.msra.mxu0 0.0
    %37 = vmatprep.subr.mxu0 0.0
    %38 = vmatpush1.msra.mxu0 0.0
    %39 = vmatprep.subr.mxu0 0.0
    %40 = vmatpush1.msra.mxu0 0.0
    %41 = vmatprep.subr.mxu0 0.0
    %42 = vmatpush1.msra.mxu0 0.0
    %43 = vmatprep.subr.mxu0 0.0
    %44 = vmatpush1.msra.mxu0 0.0
    %45 = vmatprep.subr.mxu0 0.0
    %46 = vmatpush1.msra.mxu0 0.0
    %47 = vmatprep.subr.mxu0 0.0
    %48 = vmatpush1.msra.mxu0 0.0
    %49 = vmatprep.subr.mxu0 0.0
    %50 = vmatpush1.msra.mxu0 0.0
    %51 = vmatprep.subr.mxu0 0.0
    %52 = vmatpush1.msra.mxu0 0.0
    %53 = vmatprep.subr.mxu0 0.0
    %54 = vmatpush1.msra.mxu0 0.0
    %55 = vmatprep.subr.mxu0 0.0
    %56 = vmatpush1.msra.mxu0 %v19
    %57 = vmatprep.subr.mxu0 0.0
    %58 = vmatpush1.msra.mxu0 %v18
    %59 = vmatprep.subr.mxu0 0.0
    %60 = vmatpush1.msra.mxu0 %v17
    %61 = vmatprep.subr.mxu0 0.0
    %62 = vmatpush1.msra.mxu0 %v16
    %63 = vmatprep.subr.mxu0 0.0
    %64 = vmatpush2.msra.mxu0 0.0
    %65 = vmatprep.subr.mxu0 0.0
    %66 = vmatpush2.msra.mxu0 0.0
    %67 = vmatprep.subr.mxu0 0.0
    %68 = vmatpush2.msra.mxu0 0.0
    %69 = vmatprep.subr.mxu0 0.0
    %70 = vmatpush2.msra.mxu0 0.0
    %71 = vmatprep.subr.mxu0 0.0
    %72 = vmatpush2.msra.mxu0 0.0
    %73 = vmatprep.subr.mxu0 0.0
    %74 = vmatpush2.msra.mxu0 0.0
    %75 = vmatprep.subr.mxu0 0.0
    %76 = vmatpush2.msra.mxu0 0.0
    %77 = vmatprep.subr.mxu0 0.0
    %78 = vmatpush2.msra.mxu0 0.0
    %79 = vmatprep.subr.mxu0 0.0
    %80 = vmatpush2.msra.mxu0 0.0
    %81 = vmatprep.subr.mxu0 0.0
    %82 = vmatpush2.msra.mxu0 0.0
    %83 = vmatprep.subr.mxu0 0.0
    %84 = vmatpush2.msra.mxu0 0.0
    %85 = vmatprep.subr.mxu0 0.0
    %86 = vmatpush2.msra.mxu0 0.0
    %87 = vmatprep.subr.mxu0 0.0
    %88 = vmatpush2.msra.mxu0 0.0
    %89 = vmatprep.subr.mxu0 0.0
    %90 = vmatpush2.msra.mxu0 0.0
    %91 = vmatprep.subr.mxu0 0.0
    %92 = vmatpush2.msra.mxu0 0.0
    %93 = vmatprep.subr.mxu0 0.0
    %94 = vmatpush2.msra.mxu0 0.0
    %95 = vmatprep.mubr.f32.mxu0 0.0
    %96 = vmatmul.mubr.f32.gmra.mxu0 %v29
    %v97 = vpop.f32.mrf.mxu0
    %v98 = vadd.f32 %v25, %v97
    %v99 = vpop.f32.mrf.mxu0
    %100 = vdwg.mxu0
    %vm101 = vcmask 80896
    %102 = vst.msk [vmem:[#allocation2] sm:$0xff] %vm101, %v98
    // Predicated region
    $region14: #{tpu_custom_call.1} parent=1 // pred_check
      _
    $region15: #{tpu_custom_call.1} parent=1 // pred_check_branch
      %104 = sbr.rel (0) target = $region17
    $region16: #{tpu_custom_call.1} parent=1 // pred_region
      %s106 = ssub.s32 128, 128
      %107 = vsyncadd [#allocation3], %s106
      %s109 = sshll.u32 [#allocation2], 4
      %s110 = int_to_ptr.vmem [resolvable:$true] %s109
      %112 = dma.vmem_to_hbm [thread:$0]  %s110, 128, %s3, [#allocation3]
    $region17: #{tpu_custom_call.1} parent=1 // pred_fallthru
      _
    // Predicated region
    $region18: #{tpu_custom_call.1} parent=1 // pred_check
      _
    $region19: #{tpu_custom_call.1} parent=1 // pred_check_branch
      %114 = sbr.rel (0) target = $region21
    $region20: #{tpu_custom_call.1} parent=1 // pred_region
      %115 = dma.done [#allocation3], 128
    $region21: #{tpu_custom_call.1} parent=1 // pred_fallthru
      _
    %116 = vsyncpa [#allocation3], 1

</llo_original>
